<compile_context>
chip_gen: v7x
topology: tpu7x:2x2x1
jax: 0.10.0
libtpu: 0.0.40
codegen_flags: <defaults>
</compile_context>

<pallas_src>
import jax
import jax.numpy as jnp
from jax import lax
from jax.experimental import pallas as pl
from jax.experimental.pallas import tpu as pltpu


def _pick_tile(T, cap=512):
    """Largest divisor of T that is <= cap (prefer 128-, then 8-aligned).

    Never falls back to an unbounded tile when T > cap, so VMEM stays bounded.
    """
    if T <= cap:
        return T
    for align in (128, 8, 1):
        start = cap - (cap % align)
        for t in range(start, 0, -align):
            if t > 0 and T % t == 0:
                return t
    return T  # unreachable (align=1 always finds t=1)


def _vmem_limit_bytes():
    """Explicit scoped-VMEM budget: ~3/4 of physical, capped at 100 MiB."""
    try:
        cap = pltpu.get_tpu_info().vmem_capacity_bytes
    except Exception:  # older/newer jax or interpret mode
        cap = 64 << 20
    return int(min(cap * 3 // 4, 100 << 20))


def _cc_loss_kernel(qt_ref, kt_ref,               # scalar-prefetch tile tables (SMEM)
                    xq_ref, xk_ref,               # (1, t, D) feature tiles
                    invq_ref, invk_ref,           # (1, t, 1) / (1, 1, t) inv-norms
                    iq_ref, ik_ref,               # (1, t, 1) / (1, 1, t) pos_idx views
                    out_ref,                      # (1, 8, 128) per-batch total
                    xqn_ref, acc_ref, dacc_ref):  # VMEM scratch
    s = pl.program_id(1)
    qi = qt_ref[s]
    ki = kt_ref[s]
    is_diag = qi == ki

    @pl.when(s == 0)
    def _():
        acc_ref[...] = jnp.zeros_like(acc_ref)
        dacc_ref[...] = jnp.zeros_like(dacc_ref)

    # Normalize the q-side tile once per upper-triangle row.  Rows are visited
    # row-major and every row starts on its diagonal tile (ki == qi), so this
    # amortizes the normalize + cast over all tiles of the row.
    @pl.when(is_diag)
    def _():
        xq = xq_ref[0].astype(jnp.float32)                    # (t, D)
        xqn_ref[...] = (xq * invq_ref[0]).astype(xqn_ref.dtype)

    # sim = xn_q @ x_k^T without materializing a transpose; the k-side inverse
    # norm is folded into the f32 logits as a cheap per-column scale.
    sim = lax.dot_general(
        xqn_ref[...], xk_ref[0], (((1,), (1,)), ((), ())),
        preferred_element_type=jnp.float32)                   # (t, t) f32
    sim = sim * invk_ref[0]                                   # (1, t) broadcast

    match = iq_ref[0] == ik_ref[0]                            # (t,1)==(1,t) -> bool

    # BCEWithLogits, numerically stable & fused:
    #   max(x,0) - x*y + log(1+exp(-|x|)) == max(y ? -x : x, 0) + log(1+exp(-|x|))
    loss = (jnp.maximum(jnp.where(match, -sim, sim), 0.0)
            + jnp.log(1.0 + jnp.exp(-jnp.abs(sim))))          # (t, t) f32

    # Pure-VALU accumulation; no per-step cross-lane reduce, no per-tile scale.
    acc_ref[...] += loss

    @pl.when(is_diag)
    def _():
        dacc_ref[...] += loss

    # Finalize once per batch: full T*T plane = 2 * upper(incl. diag) - diag.
    @pl.when(s == pl.num_programs(1) - 1)
    def _():
        total = 2.0 * jnp.sum(acc_ref[...]) - jnp.sum(dacc_ref[...])
        out_ref[0] = jnp.full((8, 128), total, dtype=jnp.float32)


def cc_loss(vid_feat, pos_idx, src_vid_mask=None, temperature=0.07, tile_cap=512):
    # `temperature` / `src_vid_mask` are accepted for API parity; the reference
    # forward never applies either (sim goes to BCEWithLogitsLoss unscaled).
    del temperature, src_vid_mask

    B, T, D = vid_feat.shape
    x = vid_feat
    pos_idx = pos_idx.astype(jnp.int32)

    # Lane-align the contraction dim (zero padding is exact for cosine sim).
    d_pad = max(128, ((D + 127) // 128) * 128)
    if d_pad != D:
        x = jnp.pad(x, ((0, 0), (0, 0), (0, d_pad - D)))

    # Hoisted row normalization: tiny (B, T) precompute replaces per-tile work.
    # Note: zero-norm rows produce inf/NaN exactly like the PyTorch reference.
    xf = x.astype(jnp.float32)
    inv_norm = 1.0 / jnp.sqrt(jnp.sum(xf * xf, axis=-1, keepdims=True))  # (B,T,1)
    inv_q = inv_norm                                  # (B, T, 1) — sublane view
    inv_k = inv_norm.reshape(B, 1, T)                 # (B, 1, T) — lane view
    idx_q = pos_idx.reshape(B, T, 1)                  # sublane view (no in-kernel relayout)
    idx_k = pos_idx.reshape(B, 1, T)                  # lane view

    t = _pick_tile(T, tile_cap)
    Q = T // t
    num_tiles = Q * (Q + 1) // 2

    # Upper-triangle tile schedule (row-major so each row starts on its diagonal
    # tile, matching the per-row normalized-q scratch reuse).
    qt_list, kt_list = [], []
    for qi in range(Q):
        for ki in range(qi, Q):
            qt_list.append(qi)
            kt_list.append(ki)
    qt = jnp.asarray(qt_list, dtype=jnp.int32)
    kt = jnp.asarray(kt_list, dtype=jnp.int32)

    partials = pl.pallas_call(
        _cc_loss_kernel,
        out_shape=jax.ShapeDtypeStruct((B, 8, 128), jnp.float32),
        grid_spec=pltpu.PrefetchScalarGridSpec(
            num_scalar_prefetch=2,
            grid=(B, num_tiles),
            in_specs=[
                pl.BlockSpec((1, t, d_pad), lambda b, s, qtab, ktab: (b, qtab[s], 0)),
                pl.BlockSpec((1, t, d_pad), lambda b, s, qtab, ktab: (b, ktab[s], 0)),
                pl.BlockSpec((1, t, 1),     lambda b, s, qtab, ktab: (b, qtab[s], 0)),
                pl.BlockSpec((1, 1, t),     lambda b, s, qtab, ktab: (b, 0, ktab[s])),
                pl.BlockSpec((1, t, 1),     lambda b, s, qtab, ktab: (b, qtab[s], 0)),
                pl.BlockSpec((1, 1, t),     lambda b, s, qtab, ktab: (b, 0, ktab[s])),
            ],
            out_specs=pl.BlockSpec((1, 8, 128), lambda b, s, qtab, ktab: (b, 0, 0)),
            scratch_shapes=[
                pltpu.VMEM((t, d_pad), x.dtype),      # normalized q tile (per row)
                pltpu.VMEM((t, t), jnp.float32),      # upper-triangle accumulator
                pltpu.VMEM((t, t), jnp.float32),      # diagonal-tile accumulator
            ],
        ),
        compiler_params=pltpu.CompilerParams(
            # Batch axis shards across TensorCores; the tile axis is a reduction.
            dimension_semantics=("parallel", "arbitrary"),
            vmem_limit_bytes=_vmem_limit_bytes(),
        ),
    )(qt, kt, x, x, inv_q, inv_k, idx_q, idx_k)

    # One tiny cross-batch reduction + 'mean' normalization in the wrapper.
    return jnp.sum(partials[:, 0, 0]) / jnp.float32(B * T * T)


def _cc_loss_ref(vid_feat, pos_idx):
    # Mirrors the PyTorch forward exactly (explicit num/denom division).
    x = vid_feat.astype(jnp.float32)
    norm = jnp.linalg.norm(x, axis=-1)                      # (B, T)
    denom = norm[:, :, None] * norm[:, None, :]             # (B, T, T)
    num = jnp.einsum('btd,bsd->bts', x, x)                  # (B, T, T)
    sim = num / denom
    label = (pos_idx[:, :, None] == pos_idx[:, None, :]).astype(jnp.float32)
    loss = (jnp.maximum(sim, 0.0) - sim * label
            + jnp.log1p(jnp.exp(-jnp.abs(sim))))
    return jnp.mean(loss)


if __name__ == "__main__":
    key = jax.random.PRNGKey(0)
    k1, k2 = jax.random.split(key)

    B, T, D = 2, 8, 32
    vid_feat = jax.random.normal(k1, (B, T, D), dtype=jnp.float32)
    pos_idx = jax.random.randint(k2, (B, T), minval=0, maxval=3, dtype=jnp.int32)

    out = cc_loss(vid_feat, pos_idx)
    out = jax.block_until_ready(out)

    ref = _cc_loss_ref(vid_feat, pos_idx)
    assert jnp.allclose(out, ref, rtol=1e-4, atol=1e-5), (out, ref)

    print("KERNEL_OK")
</pallas_src>

<mosaic_0001>
module attributes {stable_mosaic.version = 11 : i64} {
  func.func @_cc_loss_kernel(%arg0: i32, %arg1: i32, %arg2: memref<1xi32, #tpu.memory_space<smem>>, %arg3: memref<1xi32, #tpu.memory_space<smem>>, %arg4: memref<1x8x128xf32, #tpu.memory_space<vmem>>, %arg5: memref<1x8x128xf32, #tpu.memory_space<vmem>>, %arg6: memref<1x8x1xf32, #tpu.memory_space<vmem>>, %arg7: memref<1x1x8xf32, #tpu.memory_space<vmem>>, %arg8: memref<1x8x1xi32, #tpu.memory_space<vmem>>, %arg9: memref<1x1x8xi32, #tpu.memory_space<vmem>>, %arg10: memref<1x8x128xf32, #tpu.memory_space<vmem>>, %arg11: memref<8x128xf32, #tpu.memory_space<vmem>>, %arg12: memref<8x8xf32, #tpu.memory_space<vmem>>, %arg13: memref<8x8xf32, #tpu.memory_space<vmem>>) attributes {dimension_semantics = [#tpu.dimension_semantics<parallel>, #tpu.dimension_semantics<arbitrary>], iteration_bounds = array<i64: 2, 1>, scalar_prefetch = 2 : i64, scratch_operands = 3 : i64, tpu.core_type = #tpu.core_type<tc>, window_params = [{transform_indices = @transform_0, window_bounds = array<i64: 1, 8, 128>}, {transform_indices = @transform_1, window_bounds = array<i64: 1, 8, 128>}, {transform_indices = @transform_2, window_bounds = array<i64: 1, 8, 1>}, {transform_indices = @transform_3, window_bounds = array<i64: 1, 1, 8>}, {transform_indices = @transform_4, window_bounds = array<i64: 1, 8, 1>}, {transform_indices = @transform_5, window_bounds = array<i64: 1, 1, 8>}, {transform_indices = @transform_6, window_bounds = array<i64: 1, 8, 128>}]} {
    %0 = arith.index_cast %arg1 : i32 to index
    %1 = memref.load %arg2[%0] : memref<1xi32, #tpu.memory_space<smem>>
    %2 = arith.index_cast %arg1 : i32 to index
    %3 = memref.load %arg3[%2] : memref<1xi32, #tpu.memory_space<smem>>
    %4 = arith.cmpi eq, %1, %3 : i32
    %c0_i32 = arith.constant 0 : i32
    %5 = arith.cmpi eq, %arg1, %c0_i32 : i32
    %6 = arith.extui %5 : i1 to i32
    %c0_i32_0 = arith.constant 0 : i32
    %7 = arith.cmpi ne, %6, %c0_i32_0 : i32
    scf.if %7 {
      %cst_26 = arith.constant 0.000000e+00 : f32
      %46 = vector.broadcast %cst_26 : f32 to vector<8x8xf32>
      %c0_27 = arith.constant 0 : index
      %c0_28 = arith.constant 0 : index
      %47 = vector.load %arg12[%c0_27, %c0_28] : memref<8x8xf32, #tpu.memory_space<vmem>>, vector<8x8xf32>
      tpu.vector_store %arg12[%c0_27, %c0_28], %46 {strides = array<i32>} : memref<8x8xf32, #tpu.memory_space<vmem>>, vector<8x8xf32>,
      %cst_29 = arith.constant 0.000000e+00 : f32
      %48 = vector.broadcast %cst_29 : f32 to vector<8x8xf32>
      %c0_30 = arith.constant 0 : index
      %c0_31 = arith.constant 0 : index
      %49 = vector.load %arg13[%c0_30, %c0_31] : memref<8x8xf32, #tpu.memory_space<vmem>>, vector<8x8xf32>
      tpu.vector_store %arg13[%c0_30, %c0_31], %48 {strides = array<i32>} : memref<8x8xf32, #tpu.memory_space<vmem>>, vector<8x8xf32>,
    } else {
    }
    %8 = arith.extui %4 : i1 to i32
    %c0_i32_1 = arith.constant 0 : i32
    %9 = arith.cmpi ne, %8, %c0_i32_1 : i32
    scf.if %9 {
      %c0_26 = arith.constant 0 : index
      %c0_27 = arith.constant 0 : index
      %c0_28 = arith.constant 0 : index
      %46 = vector.load %arg4[%c0_26, %c0_27, %c0_28] : memref<1x8x128xf32, #tpu.memory_space<vmem>>, vector<1x8x128xf32>
      %47 = vector.shape_cast %46 : vector<1x8x128xf32> to vector<8x128xf32>
      %c0_29 = arith.constant 0 : index
      %c0_30 = arith.constant 0 : index
      %c0_31 = arith.constant 0 : index
      %48 = vector.load %arg6[%c0_29, %c0_30, %c0_31] : memref<1x8x1xf32, #tpu.memory_space<vmem>>, vector<1x8x1xf32>
      %49 = vector.shape_cast %48 : vector<1x8x1xf32> to vector<8x1xf32>
      %50 = vector.broadcast %49 : vector<8x1xf32> to vector<8x128xf32>
      %51 = arith.mulf %47, %50 : vector<8x128xf32>
      %c0_32 = arith.constant 0 : index
      %c0_33 = arith.constant 0 : index
      %52 = vector.load %arg11[%c0_32, %c0_33] : memref<8x128xf32, #tpu.memory_space<vmem>>, vector<8x128xf32>
      tpu.vector_store %arg11[%c0_32, %c0_33], %51 {strides = array<i32>} : memref<8x128xf32, #tpu.memory_space<vmem>>, vector<8x128xf32>,
    } else {
    }
    %c0 = arith.constant 0 : index
    %c0_2 = arith.constant 0 : index
    %10 = vector.load %arg11[%c0, %c0_2] : memref<8x128xf32, #tpu.memory_space<vmem>>, vector<8x128xf32>
    %c0_3 = arith.constant 0 : index
    %c0_4 = arith.constant 0 : index
    %c0_5 = arith.constant 0 : index
    %11 = vector.load %arg5[%c0_3, %c0_4, %c0_5] : memref<1x8x128xf32, #tpu.memory_space<vmem>>, vector<1x8x128xf32>
    %12 = vector.shape_cast %11 : vector<1x8x128xf32> to vector<8x128xf32>
    %cst = arith.constant dense<0.000000e+00> : vector<8x8xf32>
    %13 = tpu.matmul %10, %12, %cst {dimension_numbers = #tpu.dot_dimension_numbers<[1], [1], [0], [0], [0, 0, 1, 0], [], []>} : vector<8x128xf32>, vector<8x128xf32>, vector<8x8xf32> -> vector<8x8xf32>
    %c0_6 = arith.constant 0 : index
    %c0_7 = arith.constant 0 : index
    %c0_8 = arith.constant 0 : index
    %14 = vector.load %arg7[%c0_6, %c0_7, %c0_8] : memref<1x1x8xf32, #tpu.memory_space<vmem>>, vector<1x1x8xf32>
    %15 = vector.shape_cast %14 : vector<1x1x8xf32> to vector<1x8xf32>
    %16 = vector.broadcast %15 : vector<1x8xf32> to vector<8x8xf32>
    %17 = arith.mulf %13, %16 : vector<8x8xf32>
    %c0_9 = arith.constant 0 : index
    %c0_10 = arith.constant 0 : index
    %c0_11 = arith.constant 0 : index
    %18 = vector.load %arg8[%c0_9, %c0_10, %c0_11] : memref<1x8x1xi32, #tpu.memory_space<vmem>>, vector<1x8x1xi32>
    %19 = vector.shape_cast %18 : vector<1x8x1xi32> to vector<8x1xi32>
    %c0_12 = arith.constant 0 : index
    %c0_13 = arith.constant 0 : index
    %c0_14 = arith.constant 0 : index
    %20 = vector.load %arg9[%c0_12, %c0_13, %c0_14] : memref<1x1x8xi32, #tpu.memory_space<vmem>>, vector<1x1x8xi32>
    %21 = vector.shape_cast %20 : vector<1x1x8xi32> to vector<1x8xi32>
    %22 = vector.broadcast %19 : vector<8x1xi32> to vector<8x8xi32>
    %23 = vector.broadcast %21 : vector<1x8xi32> to vector<8x8xi32>
    %24 = arith.cmpi eq, %22, %23 : vector<8x8xi32>
    %cst_15 = arith.constant 0.000000e+00 : f32
    %25 = vector.broadcast %cst_15 : f32 to vector<8x8xf32>
    %26 = arith.subf %25, %17 : vector<8x8xf32>
    %27 = arith.select %24, %26, %17 : vector<8x8xi1>, vector<8x8xf32>
    %cst_16 = arith.constant 0.000000e+00 : f32
    %28 = vector.broadcast %cst_16 : f32 to vector<8x8xf32>
    %29 = arith.maximumf %27, %28 : vector<8x8xf32>
    %30 = math.absf %17 : vector<8x8xf32>
    %cst_17 = arith.constant 0.000000e+00 : f32
    %31 = vector.broadcast %cst_17 : f32 to vector<8x8xf32>
    %32 = arith.subf %31, %30 : vector<8x8xf32>
    %33 = math.exp %32 : vector<8x8xf32>
    %cst_18 = arith.constant 1.000000e+00 : f32
    %34 = vector.broadcast %cst_18 : f32 to vector<8x8xf32>
    %35 = arith.addf %34, %33 : vector<8x8xf32>
    %36 = math.log %35 : vector<8x8xf32>
    %37 = arith.addf %29, %36 : vector<8x8xf32>
    %c0_19 = arith.constant 0 : index
    %c0_20 = arith.constant 0 : index
    %38 = vector.load %arg12[%c0_19, %c0_20] : memref<8x8xf32, #tpu.memory_space<vmem>>, vector<8x8xf32>
    %39 = arith.addf %38, %37 : vector<8x8xf32>
    %c0_21 = arith.constant 0 : index
    %c0_22 = arith.constant 0 : index
    %40 = vector.load %arg12[%c0_21, %c0_22] : memref<8x8xf32, #tpu.memory_space<vmem>>, vector<8x8xf32>
    tpu.vector_store %arg12[%c0_21, %c0_22], %39 {strides = array<i32>} : memref<8x8xf32, #tpu.memory_space<vmem>>, vector<8x8xf32>,
    %41 = arith.extui %4 : i1 to i32
    %c0_i32_23 = arith.constant 0 : i32
    %42 = arith.cmpi ne, %41, %c0_i32_23 : i32
    scf.if %42 {
      %c0_26 = arith.constant 0 : index
      %c0_27 = arith.constant 0 : index
      %46 = vector.load %arg13[%c0_26, %c0_27] : memref<8x8xf32, #tpu.memory_space<vmem>>, vector<8x8xf32>
      %47 = arith.addf %46, %37 : vector<8x8xf32>
      %c0_28 = arith.constant 0 : index
      %c0_29 = arith.constant 0 : index
      %48 = vector.load %arg13[%c0_28, %c0_29] : memref<8x8xf32, #tpu.memory_space<vmem>>, vector<8x8xf32>
      tpu.vector_store %arg13[%c0_28, %c0_29], %47 {strides = array<i32>} : memref<8x8xf32, #tpu.memory_space<vmem>>, vector<8x8xf32>,
    } else {
    }
    %c0_i32_24 = arith.constant 0 : i32
    %43 = arith.cmpi eq, %arg1, %c0_i32_24 : i32
    %44 = arith.extui %43 : i1 to i32
    %c0_i32_25 = arith.constant 0 : i32
    %45 = arith.cmpi ne, %44, %c0_i32_25 : i32
    scf.if %45 {
      %c0_26 = arith.constant 0 : index
      %c0_27 = arith.constant 0 : index
      %46 = vector.load %arg12[%c0_26, %c0_27] : memref<8x8xf32, #tpu.memory_space<vmem>>, vector<8x8xf32>
      %47 = vector.shape_cast %46 : vector<8x8xf32> to vector<1x8x8xf32>
      %cst_28 = arith.constant dense<0.000000e+00> : vector<1xf32>
      %48 = vector.multi_reduction <add>, %47, %cst_28 [1, 2] : vector<1x8x8xf32> to vector<1xf32>
      %49 = vector.shape_cast %48 : vector<1xf32> to vector<1x1x1xf32>
      %50 = vector.extract %49[0, 0, 0] : f32 from vector<1x1x1xf32>
      %cst_29 = arith.constant 2.000000e+00 : f32
      %51 = arith.mulf %cst_29, %50 : f32
      %c0_30 = arith.constant 0 : index
      %c0_31 = arith.constant 0 : index
      %52 = vector.load %arg13[%c0_30, %c0_31] : memref<8x8xf32, #tpu.memory_space<vmem>>, vector<8x8xf32>
      %53 = vector.shape_cast %52 : vector<8x8xf32> to vector<1x8x8xf32>
      %cst_32 = arith.constant dense<0.000000e+00> : vector<1xf32>
      %54 = vector.multi_reduction <add>, %53, %cst_32 [1, 2] : vector<1x8x8xf32> to vector<1xf32>
      %55 = vector.shape_cast %54 : vector<1xf32> to vector<1x1x1xf32>
      %56 = vector.extract %55[0, 0, 0] : f32 from vector<1x1x1xf32>
      %57 = arith.subf %51, %56 : f32
      %58 = vector.broadcast %57 : f32 to vector<8x128xf32>
      %c0_33 = arith.constant 0 : index
      %c0_34 = arith.constant 0 : index
      %c0_35 = arith.constant 0 : index
      %59 = vector.load %arg10[%c0_33, %c0_34, %c0_35] : memref<1x8x128xf32, #tpu.memory_space<vmem>>, vector<1x8x128xf32>
      %60 = vector.shape_cast %59 : vector<1x8x128xf32> to vector<8x128xf32>
      %61 = vector.shape_cast %58 : vector<8x128xf32> to vector<1x8x128xf32>
      tpu.vector_store %arg10[%c0_33, %c0_34, %c0_35], %61 {strides = array<i32>} : memref<1x8x128xf32, #tpu.memory_space<vmem>>, vector<1x8x128xf32>,
    } else {
    }
    return
  }
  func.func @transform_0(%arg0: i32, %arg1: i32, %arg2: memref<1xi32, #tpu.memory_space<smem>>, %arg3: memref<1xi32, #tpu.memory_space<smem>>) -> (i32, i32, i32) {
    %0 = arith.index_cast %arg1 : i32 to index
    %1 = memref.load %arg2[%0] : memref<1xi32, #tpu.memory_space<smem>>
    %c0_i32 = arith.constant 0 : i32
    %c0_i32_0 = arith.constant 0 : i32
    return %arg0, %1, %c0_i32 : i32, i32, i32
  }
  func.func @transform_1(%arg0: i32, %arg1: i32, %arg2: memref<1xi32, #tpu.memory_space<smem>>, %arg3: memref<1xi32, #tpu.memory_space<smem>>) -> (i32, i32, i32) {
    %0 = arith.index_cast %arg1 : i32 to index
    %1 = memref.load %arg3[%0] : memref<1xi32, #tpu.memory_space<smem>>
    %c0_i32 = arith.constant 0 : i32
    %c0_i32_0 = arith.constant 0 : i32
    return %arg0, %1, %c0_i32 : i32, i32, i32
  }
  func.func @transform_2(%arg0: i32, %arg1: i32, %arg2: memref<1xi32, #tpu.memory_space<smem>>, %arg3: memref<1xi32, #tpu.memory_space<smem>>) -> (i32, i32, i32) {
    %0 = arith.index_cast %arg1 : i32 to index
    %1 = memref.load %arg2[%0] : memref<1xi32, #tpu.memory_space<smem>>
    %c0_i32 = arith.constant 0 : i32
    %c0_i32_0 = arith.constant 0 : i32
    return %arg0, %1, %c0_i32 : i32, i32, i32
  }
  func.func @transform_3(%arg0: i32, %arg1: i32, %arg2: memref<1xi32, #tpu.memory_space<smem>>, %arg3: memref<1xi32, #tpu.memory_space<smem>>) -> (i32, i32, i32) {
    %0 = arith.index_cast %arg1 : i32 to index
    %1 = memref.load %arg3[%0] : memref<1xi32, #tpu.memory_space<smem>>
    %c0_i32 = arith.constant 0 : i32
    %c0_i32_0 = arith.constant 0 : i32
    return %arg0, %c0_i32, %1 : i32, i32, i32
  }
  func.func @transform_4(%arg0: i32, %arg1: i32, %arg2: memref<1xi32, #tpu.memory_space<smem>>, %arg3: memref<1xi32, #tpu.memory_space<smem>>) -> (i32, i32, i32) {
    %0 = arith.index_cast %arg1 : i32 to index
    %1 = memref.load %arg2[%0] : memref<1xi32, #tpu.memory_space<smem>>
    %c0_i32 = arith.constant 0 : i32
    %c0_i32_0 = arith.constant 0 : i32
    return %arg0, %1, %c0_i32 : i32, i32, i32
  }
  func.func @transform_5(%arg0: i32, %arg1: i32, %arg2: memref<1xi32, #tpu.memory_space<smem>>, %arg3: memref<1xi32, #tpu.memory_space<smem>>) -> (i32, i32, i32) {
    %0 = arith.index_cast %arg1 : i32 to index
    %1 = memref.load %arg3[%0] : memref<1xi32, #tpu.memory_space<smem>>
    %c0_i32 = arith.constant 0 : i32
    %c0_i32_0 = arith.constant 0 : i32
    return %arg0, %c0_i32, %1 : i32, i32, i32
  }
  func.func @transform_6(%arg0: i32, %arg1: i32, %arg2: memref<1xi32, #tpu.memory_space<smem>>, %arg3: memref<1xi32, #tpu.memory_space<smem>>) -> (i32, i32, i32) {
    %c0_i32 = arith.constant 0 : i32
    %c0_i32_0 = arith.constant 0 : i32
    %c0_i32_1 = arith.constant 0 : i32
    return %arg0, %c0_i32, %c0_i32_0 : i32, i32, i32
  }
}

</mosaic_0001>

<llo_original>
// kernel: tpu_custom_call.1
$region0: #{tpu_custom_call.1}
  #allocation0 [shape = 'u32[]', space=smem, size = 0x4, offset = 0x4, fixed_abs, tag = 'smem constant byte address 0x4 - core index']
  #allocation1 [shape = 'u32[144,128]{1,0:T(1,128)}', space=vmem, size = 0x12000, scoped, tag = 'internal scratch']
  #allocation2 [shape = 'f32[8,128]{1,0:T(8,128)}', space=vmem, size = 0x1000, scoped, tag = 'scratch operand']
  #allocation3 [shape = 'f32[8,8]{1,0:T(8,128)}', space=vmem, size = 0x1000, scoped, tag = 'scratch operand']
  #allocation4 [shape = 'f32[8,8]{1,0:T(8,128)}', space=vmem, size = 0x1000, scoped, tag = 'scratch operand']
  #allocation5 [shape = 's32[1]{0}', space=sflag, size = 0x4, scoped, tag = 'scoped memory for tpu_custom_call.1']
  #allocation6 [shape = 's32[1]{0:T(128)S(6)}', space=smem, size = 0x200, scoped, tag = 'prefetched SMEM operand 0']
  #allocation7 [shape = 's32[1]{0:T(128)S(6)}', space=smem, size = 0x200, scoped, tag = 'prefetched SMEM operand 1']
  %s0 = inlined_call_operand.<no memory space> [shape: s32[1], index: 0, kind: input, shape index: {}]
  %s1 = inlined_call_operand.<no memory space> [shape: s32[1], index: 1, kind: input, shape index: {}]
  %s2 = inlined_call_operand.vmem [shape: f32[2,8,128], index: 2, kind: input, shape index: {}]
  %s3 = inlined_call_operand.vmem [shape: f32[2,8,128], index: 3, kind: input, shape index: {}]
  %s4 = inlined_call_operand.vmem [shape: f32[2,8,1], index: 4, kind: input, shape index: {}]
  %s5 = inlined_call_operand.vmem [shape: f32[2,1,8], index: 5, kind: input, shape index: {}]
  %s6 = inlined_call_operand.vmem [shape: s32[2,8,1], index: 6, kind: input, shape index: {}]
  %s7 = inlined_call_operand.vmem [shape: s32[2,1,8], index: 7, kind: input, shape index: {}]
  %s8 = inlined_call_operand.hbm [shape: f32[2,8,128], index: 8, kind: output, shape index: {}]
  %s9 = sld [smem:[#allocation0]]
  $region73: #{tpu_custom_call.1} parent=0
    _
  %s11 = ssub.s32 1, %s9
  %s12 = scalar_select 0, %s11, %s9
  %13 = sst [smem:[#allocation6]] %s0
  %14 = sst [smem:[#allocation7]] %s1
  $region1: #{tpu_custom_call.1} parent=0
    #allocation8 [shape = 'u8[8192]{0}', space=vmem, size = 0x2000, scoped, tag = 'output window, operand 0']
    #allocation9 [shape = 's32[2]{0}', space=sflag, size = 0x8, scoped, tag = 'scoped memory for tpu_custom_call.1']
    %15 = vsyncpa [#allocation9], 0
    %s16 = scalar_lea.sflag [#allocation9], 1
    %17 = vsyncpa %s16, 0
    loop: start=0, step=1, limit=4
    $region2: #{tpu_custom_call.1} parent=1 // loop_pre_header
      _
    $region3: #{tpu_custom_call.1} parent=1 // loop_header
      %s19 = sphi 0, %s23
      %p20 = scmp.ge.s32.totalorder %s19, 4
      %s26 = sphi 0, %s38
      %s27 = sphi 0, %s34
      %s28 = sphi 0, %s26
      %s29 = sphi 0, %s27
      %s30 = sphi 0, %s28
      %s31 = sphi 0, %s29
      %s45 = sphi 0, %s47
      %s48 = sphi 0, %s45
      %s49 = sphi 0, %s48
      %s65 = sphi 0, %s49
      %s75 = sphi 0, %s77
      %s78 = sphi 0, %s75
      %s79 = sphi 0, %s78
      %s95 = sphi 0, %s79
      %s105 = sphi 0, %s107
      %s108 = sphi 0, %s105
      %s109 = sphi 0, %s108
      %s125 = sphi 0, %s109
      %s135 = sphi 0, %s137
      %s138 = sphi 0, %s135
      %s139 = sphi 0, %s138
      %s155 = sphi 0, %s139
      %s165 = sphi 0, %s167
      %s168 = sphi 0, %s165
      %s169 = sphi 0, %s168
      %s185 = sphi 0, %s169
      %s195 = sphi 0, %s197
      %s198 = sphi 0, %s195
      %s199 = sphi 0, %s198
      %s215 = sphi 0, %s199
      %s221 = sphi 0, %s223
      %s224 = sphi 0, %s221
      %s225 = sphi 0, %s224
      %s241 = sphi 0, %s225
    $region4: #{tpu_custom_call.1} parent=1 // loop_header_branch
      %22 = sbr.rel (%p20) target = $region8
    $region5: #{tpu_custom_call.1} parent=1 // loop_body
      %s24 = ssub.s32 %s19, 1
      %s25 = ssub.s32 %s19, 2
      %s32 = sadd.s32 1, %s27
      %p33 = scmp.ge.s32.totalorder %s32, 1
      %s34 = scalar_select %p33, 0, %s32
      %s35 = sadd.s32 1, %s26
      %s36 = scalar_select %p33, %s35, %s26
      %p37 = scmp.ge.s32.totalorder %s36, 2
      %s38 = scalar_select %p37, 0, %s36
      %s39 = sld [smem:[#allocation6 + %s27]]
      %s40 = sld [smem:[#allocation6 + %s34]]
      %s41 = ssub.s32 %s26, %s38
      %s42 = ssub.s32 %s39, %s40
      %s43 = sor.u32 %s41, %s42
      %p44 = scmp.eq.s32.totalorder %s43, 0
      %s46 = sadd.s32 %s45, 1
      %s47 = scalar_select %p44, %s45, %s46
      %p50 = pneg %p44
      %p51 = scmp.eq.s32.totalorder %s19, 1
      %p52 = por %p50, %p51
      %p53 = scmp.ne.s32.totalorder %s45, %s48
      %p54 = scmp.eq.s32.totalorder %s19, 0
      %p55 = por %p53, %p54
      %p56 = scmp.ne.s32.totalorder %s45, %s48
      %p57 = scmp.eq.s32.totalorder %s24, 1
      %p58 = por %p56, %p57
      %p59 = scmp.ne.s32.totalorder %s48, %s49
      %p60 = scmp.eq.s32.totalorder %s24, 0
      %p61 = por %p59, %p60
      %p62 = scmp.ne.s32.totalorder %s48, %s49
      %p63 = scmp.eq.s32.totalorder %s25, 1
      %p64 = por %p62, %p63
      %p66 = scmp.ne.s32.totalorder %s49, %s65
      %p67 = scmp.eq.s32.totalorder %s25, 0
      %p68 = por %p66, %p67
      %s69 = sld [smem:[#allocation7 + %s27]]
      %s70 = sld [smem:[#allocation7 + %s34]]
      %s71 = ssub.s32 %s26, %s38
      %s72 = ssub.s32 %s69, %s70
      %s73 = sor.u32 %s71, %s72
      %p74 = scmp.eq.s32.totalorder %s73, 0
      %s76 = sadd.s32 %s75, 1
      %s77 = scalar_select %p74, %s75, %s76
      %p80 = pneg %p74
      %p81 = scmp.eq.s32.totalorder %s19, 1
      %p82 = por %p80, %p81
      %p83 = scmp.ne.s32.totalorder %s75, %s78
      %p84 = scmp.eq.s32.totalorder %s19, 0
      %p85 = por %p83, %p84
      %p86 = scmp.ne.s32.totalorder %s75, %s78
      %p87 = scmp.eq.s32.totalorder %s24, 1
      %p88 = por %p86, %p87
      %p89 = scmp.ne.s32.totalorder %s78, %s79
      %p90 = scmp.eq.s32.totalorder %s24, 0
      %p91 = por %p89, %p90
      %p92 = scmp.ne.s32.totalorder %s78, %s79
      %p93 = scmp.eq.s32.totalorder %s25, 1
      %p94 = por %p92, %p93
      %p96 = scmp.ne.s32.totalorder %s79, %s95
      %p97 = scmp.eq.s32.totalorder %s25, 0
      %p98 = por %p96, %p97
      %s99 = sld [smem:[#allocation6 + %s27]]
      %s100 = sld [smem:[#allocation6 + %s34]]
      %s101 = ssub.s32 %s26, %s38
      %s102 = ssub.s32 %s99, %s100
      %s103 = sor.u32 %s101, %s102
      %p104 = scmp.eq.s32.totalorder %s103, 0
      %s106 = sadd.s32 %s105, 1
      %s107 = scalar_select %p104, %s105, %s106
      %p110 = pneg %p104
      %p111 = scmp.eq.s32.totalorder %s19, 1
      %p112 = por %p110, %p111
      %p113 = scmp.ne.s32.totalorder %s105, %s108
      %p114 = scmp.eq.s32.totalorder %s19, 0
      %p115 = por %p113, %p114
      %p116 = scmp.ne.s32.totalorder %s105, %s108
      %p117 = scmp.eq.s32.totalorder %s24, 1
      %p118 = por %p116, %p117
      %p119 = scmp.ne.s32.totalorder %s108, %s109
      %p120 = scmp.eq.s32.totalorder %s24, 0
      %p121 = por %p119, %p120
      %p122 = scmp.ne.s32.totalorder %s108, %s109
      %p123 = scmp.eq.s32.totalorder %s25, 1
      %p124 = por %p122, %p123
      %p126 = scmp.ne.s32.totalorder %s109, %s125
      %p127 = scmp.eq.s32.totalorder %s25, 0
      %p128 = por %p126, %p127
      %s129 = sld [smem:[#allocation7 + %s27]]
      %s130 = sld [smem:[#allocation7 + %s34]]
      %s131 = ssub.s32 %s26, %s38
      %s132 = ssub.s32 %s129, %s130
      %s133 = sor.u32 %s131, %s132
      %p134 = scmp.eq.s32.totalorder %s133, 0
      %s136 = sadd.s32 %s135, 1
      %s137 = scalar_select %p134, %s135, %s136
      %p140 = pneg %p134
      %p141 = scmp.eq.s32.totalorder %s19, 1
      %p142 = por %p140, %p141
      %p143 = scmp.ne.s32.totalorder %s135, %s138
      %p144 = scmp.eq.s32.totalorder %s19, 0
      %p145 = por %p143, %p144
      %p146 = scmp.ne.s32.totalorder %s135, %s138
      %p147 = scmp.eq.s32.totalorder %s24, 1
      %p148 = por %p146, %p147
      %p149 = scmp.ne.s32.totalorder %s138, %s139
      %p150 = scmp.eq.s32.totalorder %s24, 0
      %p151 = por %p149, %p150
      %p152 = scmp.ne.s32.totalorder %s138, %s139
      %p153 = scmp.eq.s32.totalorder %s25, 1
      %p154 = por %p152, %p153
      %p156 = scmp.ne.s32.totalorder %s139, %s155
      %p157 = scmp.eq.s32.totalorder %s25, 0
      %p158 = por %p156, %p157
      %s159 = sld [smem:[#allocation6 + %s27]]
      %s160 = sld [smem:[#allocation6 + %s34]]
      %s161 = ssub.s32 %s26, %s38
      %s162 = ssub.s32 %s159, %s160
      %s163 = sor.u32 %s161, %s162
      %p164 = scmp.eq.s32.totalorder %s163, 0
      %s166 = sadd.s32 %s165, 1
      %s167 = scalar_select %p164, %s165, %s166
      %p170 = pneg %p164
      %p171 = scmp.eq.s32.totalorder %s19, 1
      %p172 = por %p170, %p171
      %p173 = scmp.ne.s32.totalorder %s165, %s168
      %p174 = scmp.eq.s32.totalorder %s19, 0
      %p175 = por %p173, %p174
      %p176 = scmp.ne.s32.totalorder %s165, %s168
      %p177 = scmp.eq.s32.totalorder %s24, 1
      %p178 = por %p176, %p177
      %p179 = scmp.ne.s32.totalorder %s168, %s169
      %p180 = scmp.eq.s32.totalorder %s24, 0
      %p181 = por %p179, %p180
      %p182 = scmp.ne.s32.totalorder %s168, %s169
      %p183 = scmp.eq.s32.totalorder %s25, 1
      %p184 = por %p182, %p183
      %p186 = scmp.ne.s32.totalorder %s169, %s185
      %p187 = scmp.eq.s32.totalorder %s25, 0
      %p188 = por %p186, %p187
      %s189 = sld [smem:[#allocation7 + %s27]]
      %s190 = sld [smem:[#allocation7 + %s34]]
      %s191 = ssub.s32 %s26, %s38
      %s192 = ssub.s32 %s189, %s190
      %s193 = sor.u32 %s191, %s192
      %p194 = scmp.eq.s32.totalorder %s193, 0
      %s196 = sadd.s32 %s195, 1
      %s197 = scalar_select %p194, %s195, %s196
      %p200 = pneg %p194
      %p201 = scmp.eq.s32.totalorder %s19, 1
      %p202 = por %p200, %p201
      %p203 = scmp.ne.s32.totalorder %s195, %s198
      %p204 = scmp.eq.s32.totalorder %s19, 0
      %p205 = por %p203, %p204
      %p206 = scmp.ne.s32.totalorder %s195, %s198
      %p207 = scmp.eq.s32.totalorder %s24, 1
      %p208 = por %p206, %p207
      %p209 = scmp.ne.s32.totalorder %s198, %s199
      %p210 = scmp.eq.s32.totalorder %s24, 0
      %p211 = por %p209, %p210
      %p212 = scmp.ne.s32.totalorder %s198, %s199
      %p213 = scmp.eq.s32.totalorder %s25, 1
      %p214 = por %p212, %p213
      %p216 = scmp.ne.s32.totalorder %s199, %s215
      %p217 = scmp.eq.s32.totalorder %s25, 0
      %p218 = por %p216, %p217
      %s219 = ssub.s32 %s26, %s38
      %p220 = scmp.eq.s32.totalorder %s219, 0
      %s222 = sadd.s32 %s221, 1
      %s223 = scalar_select %p220, %s221, %s222
      %p226 = pneg %p220
      %p227 = scmp.eq.s32.totalorder %s19, 1
      %p228 = por %p226, %p227
      %p229 = scmp.ne.s32.totalorder %s221, %s224
      %p230 = scmp.eq.s32.totalorder %s19, 0
      %p231 = por %p229, %p230
      %p232 = scmp.ne.s32.totalorder %s221, %s224
      %p233 = scmp.eq.s32.totalorder %s24, 1
      %p234 = por %p232, %p233
      %p235 = scmp.ne.s32.totalorder %s224, %s225
      %p236 = scmp.eq.s32.totalorder %s24, 0
      %p237 = por %p235, %p236
      %p238 = scmp.ne.s32.totalorder %s224, %s225
      %p239 = scmp.eq.s32.totalorder %s25, 1
      %p240 = por %p238, %p239
      %p242 = scmp.ne.s32.totalorder %s225, %s241
      %p243 = scmp.eq.s32.totalorder %s25, 0
      %p244 = por %p242, %p243
      %p245 = scmp.le.s32.totalorder 1, %s19
      %p246 = scmp.lt.s32.totalorder %s19, 3
      %p247 = pnand %p245, %p246
      %p248 = pneg %p247
      // Predicated region
      $region9: #{tpu_custom_call.1} parent=5 // pred_check
        _
      $region10: #{tpu_custom_call.1} parent=5 // pred_check_branch
        %250 = sbr.rel (%p247) target = $region12
      $region11: #{tpu_custom_call.1} parent=5 // pred_region
        %s251 = ssub.s32 %s19, 1
      $region12: #{tpu_custom_call.1} parent=5 // pred_fallthru
        _
      %p252 = scmp.lt.s32.totalorder %s19, 2
      // Predicated region
      $region13: #{tpu_custom_call.1} parent=5 // pred_check
        %p253 = pneg %p252
      $region14: #{tpu_custom_call.1} parent=5 // pred_check_branch
        %255 = sbr.rel (%p253) target = $region16
      $region15: #{tpu_custom_call.1} parent=5 // pred_region
        // Predicated region
        $region17: #{tpu_custom_call.1} parent=15 // pred_check
          %p256 = pneg %p55
        $region18: #{tpu_custom_call.1} parent=15 // pred_check_branch
          %258 = sbr.rel (%p256) target = $region20
        $region19: #{tpu_custom_call.1} parent=15 // pred_region
          %s259 = sld [smem:[#allocation6 + %s27]]
          %p260 = scmp.lt.s32.totalorder %s26, 1
          %s261 = scalar_select %p260, %s26, 1
          %p262 = scmp.lt.s32.totalorder %s259, 0
          %s263 = scalar_select %p262, %s259, 0
          %s264 = sadd.s32 %s263, %s261
          %s265 = smul.addr %s264, 8
          %s266 = scalar_lea.vmem %s2, %s265
          %s267 = sld [smem:[#allocation6 + %s27]]
        $region20: #{tpu_custom_call.1} parent=15 // pred_fallthru
          _
        // Predicated region
        $region21: #{tpu_custom_call.1} parent=15 // pred_check
          %p268 = pneg %p85
        $region22: #{tpu_custom_call.1} parent=15 // pred_check_branch
          %270 = sbr.rel (%p268) target = $region24
        $region23: #{tpu_custom_call.1} parent=15 // pred_region
          %s271 = sld [smem:[#allocation7 + %s27]]
          %p272 = scmp.lt.s32.totalorder %s26, 1
          %s273 = scalar_select %p272, %s26, 1
          %p274 = scmp.lt.s32.totalorder %s271, 0
          %s275 = scalar_select %p274, %s271, 0
          %s276 = sadd.s32 %s275, %s273
          %s277 = smul.addr %s276, 8
          %s278 = scalar_lea.vmem %s3, %s277
          %s279 = sld [smem:[#allocation7 + %s27]]
        $region24: #{tpu_custom_call.1} parent=15 // pred_fallthru
          _
        // Predicated region
        $region25: #{tpu_custom_call.1} parent=15 // pred_check
          %p280 = pneg %p115
        $region26: #{tpu_custom_call.1} parent=15 // pred_check_branch
          %282 = sbr.rel (%p280) target = $region28
        $region27: #{tpu_custom_call.1} parent=15 // pred_region
          %s283 = sld [smem:[#allocation6 + %s27]]
          %p284 = scmp.lt.s32.totalorder %s26, 1
          %s285 = scalar_select %p284, %s26, 1
          %p286 = scmp.lt.s32.totalorder %s283, 0
          %s287 = scalar_select %p286, %s283, 0
          %s288 = sadd.s32 %s287, %s285
          %s289 = smul.addr %s288, 8
          %s290 = scalar_lea.vmem %s4, %s289
          %s291 = sld [smem:[#allocation6 + %s27]]
        $region28: #{tpu_custom_call.1} parent=15 // pred_fallthru
          _
        // Predicated region
        $region29: #{tpu_custom_call.1} parent=15 // pred_check
          %p292 = pneg %p145
        $region30: #{tpu_custom_call.1} parent=15 // pred_check_branch
          %294 = sbr.rel (%p292) target = $region32
        $region31: #{tpu_custom_call.1} parent=15 // pred_region
          %s295 = sld [smem:[#allocation7 + %s27]]
          %p296 = scmp.lt.s32.totalorder %s26, 1
          %s297 = scalar_select %p296, %s26, 1
          %p298 = scmp.lt.s32.totalorder %s295, 0
          %s299 = scalar_select %p298, %s295, 0
          %s300 = sadd.s32 %s299, %s297
          %s301 = scalar_lea.vmem %s5, %s300
          %s302 = sld [smem:[#allocation7 + %s27]]
        $region32: #{tpu_custom_call.1} parent=15 // pred_fallthru
          _
        // Predicated region
        $region33: #{tpu_custom_call.1} parent=15 // pred_check
          %p303 = pneg %p175
        $region34: #{tpu_custom_call.1} parent=15 // pred_check_branch
          %305 = sbr.rel (%p303) target = $region36
        $region35: #{tpu_custom_call.1} parent=15 // pred_region
          %s306 = sld [smem:[#allocation6 + %s27]]
          %p307 = scmp.lt.s32.totalorder %s26, 1
          %s308 = scalar_select %p307, %s26, 1
          %p309 = scmp.lt.s32.totalorder %s306, 0
          %s310 = scalar_select %p309, %s306, 0
          %s311 = sadd.s32 %s310, %s308
          %s312 = smul.addr %s311, 8
          %s313 = scalar_lea.vmem %s6, %s312
          %s314 = sld [smem:[#allocation6 + %s27]]
        $region36: #{tpu_custom_call.1} parent=15 // pred_fallthru
          _
        // Predicated region
        $region37: #{tpu_custom_call.1} parent=15 // pred_check
          %p315 = pneg %p205
        $region38: #{tpu_custom_call.1} parent=15 // pred_check_branch
          %317 = sbr.rel (%p315) target = $region40
        $region39: #{tpu_custom_call.1} parent=15 // pred_region
          %s318 = sld [smem:[#allocation7 + %s27]]
          %p319 = scmp.lt.s32.totalorder %s26, 1
          %s320 = scalar_select %p319, %s26, 1
          %p321 = scmp.lt.s32.totalorder %s318, 0
          %s322 = scalar_select %p321, %s318, 0
          %s323 = sadd.s32 %s322, %s320
          %s324 = scalar_lea.vmem %s7, %s323
          %s325 = sld [smem:[#allocation7 + %s27]]
        $region40: #{tpu_custom_call.1} parent=15 // pred_fallthru
          _
      $region16: #{tpu_custom_call.1} parent=5 // pred_fallthru
        _
      %p326 = scmp.le.s32.totalorder 1, %s19
      %p327 = scmp.lt.s32.totalorder %s19, 3
      %p328 = pnand %p326, %p327
      %p329 = pneg %p328
      // Predicated region
      $region41: #{tpu_custom_call.1} parent=5 // pred_check
        _
      $region42: #{tpu_custom_call.1} parent=5 // pred_check_branch
        %331 = sbr.rel (%p328) target = $region44
      $region43: #{tpu_custom_call.1} parent=5 // pred_region
        %s332 = ssub.s32 %s19, 1
        %s333 = sld [smem:[#allocation6 + %s29]]
        %p334 = scmp.lt.s32.totalorder %s28, 1
        %s335 = scalar_select %p334, %s28, 1
        %p336 = scmp.lt.s32.totalorder %s333, 0
        %s337 = scalar_select %p336, %s333, 0
        %s338 = sadd.s32 %s337, %s335
        %s339 = smul.addr %s338, 8
        %s340 = scalar_lea.vmem %s2, %s339
        %p341 = pneg %p61
        %p342 = pneg %p58
        %s343 = sld [smem:[#allocation7 + %s29]]
        %p344 = scmp.lt.s32.totalorder %s28, 1
        %s345 = scalar_select %p344, %s28, 1
        %p346 = scmp.lt.s32.totalorder %s343, 0
        %s347 = scalar_select %p346, %s343, 0
        %s348 = sadd.s32 %s347, %s345
        %s349 = smul.addr %s348, 8
        %s350 = scalar_lea.vmem %s3, %s349
        %p351 = pneg %p91
        %p352 = pneg %p88
        %s353 = sld [smem:[#allocation6 + %s29]]
        %p354 = scmp.lt.s32.totalorder %s28, 1
        %s355 = scalar_select %p354, %s28, 1
        %p356 = scmp.lt.s32.totalorder %s353, 0
        %s357 = scalar_select %p356, %s353, 0
        %s358 = sadd.s32 %s357, %s355
        %s359 = smul.addr %s358, 8
        %s360 = scalar_lea.vmem %s4, %s359
        %p361 = pneg %p121
        %p362 = pneg %p118
        %s363 = sld [smem:[#allocation7 + %s29]]
        %p364 = scmp.lt.s32.totalorder %s28, 1
        %s365 = scalar_select %p364, %s28, 1
        %p366 = scmp.lt.s32.totalorder %s363, 0
        %s367 = scalar_select %p366, %s363, 0
        %s368 = sadd.s32 %s367, %s365
        %s369 = scalar_lea.vmem %s5, %s368
        %p370 = pneg %p151
        %p371 = pneg %p148
        %s372 = sld [smem:[#allocation6 + %s29]]
        %p373 = scmp.lt.s32.totalorder %s28, 1
        %s374 = scalar_select %p373, %s28, 1
        %p375 = scmp.lt.s32.totalorder %s372, 0
        %s376 = scalar_select %p375, %s372, 0
        %s377 = sadd.s32 %s376, %s374
        %s378 = smul.addr %s377, 8
        %s379 = scalar_lea.vmem %s6, %s378
        %p380 = pneg %p181
        %p381 = pneg %p178
        %s382 = sld [smem:[#allocation7 + %s29]]
        %p383 = scmp.lt.s32.totalorder %s28, 1
        %s384 = scalar_select %p383, %s28, 1
        %p385 = scmp.lt.s32.totalorder %s382, 0
        %s386 = scalar_select %p385, %s382, 0
        %s387 = sadd.s32 %s386, %s384
        %s388 = scalar_lea.vmem %s7, %s387
        %p389 = pneg %p211
        %p390 = pneg %p208
        %p391 = pneg %p237
        %p392 = pneg %p234
        %s393 = sand.u32 %s224, 1
        %s394 = scalar_lea.sflag [#allocation9], %s393
        %s395 = sand.u32 %s224, 1
        %s396 = smul.addr %s395, 8
        %s397 = scalar_lea.vmem [#allocation8], %s396
        %s398 = sld [smem:[#allocation6 + %s29]]
        %p399 = scmp.lt.s32.totalorder %s28, 1
        %s400 = scalar_select %p399, %s28, 1
        %p401 = scmp.lt.s32.totalorder %s398, 0
        %s402 = scalar_select %p401, %s398, 0
        %s403 = sadd.s32 %s402, %s400
        %s404 = smul.addr %s403, 8
        %s405 = scalar_lea.vmem %s2, %s404
        %s406 = sld [smem:[#allocation6 + %s29]]
        %s407 = sld [smem:[#allocation7 + %s29]]
        %p408 = scmp.lt.s32.totalorder %s28, 1
        %s409 = scalar_select %p408, %s28, 1
        %p410 = scmp.lt.s32.totalorder %s407, 0
        %s411 = scalar_select %p410, %s407, 0
        %s412 = sadd.s32 %s411, %s409
        %s413 = smul.addr %s412, 8
        %s414 = scalar_lea.vmem %s3, %s413
        %s415 = sld [smem:[#allocation7 + %s29]]
        %s416 = sld [smem:[#allocation6 + %s29]]
        %p417 = scmp.lt.s32.totalorder %s28, 1
        %s418 = scalar_select %p417, %s28, 1
        %p419 = scmp.lt.s32.totalorder %s416, 0
        %s420 = scalar_select %p419, %s416, 0
        %s421 = sadd.s32 %s420, %s418
        %s422 = smul.addr %s421, 8
        %s423 = scalar_lea.vmem %s4, %s422
        %s424 = sld [smem:[#allocation6 + %s29]]
        %s425 = sld [smem:[#allocation7 + %s29]]
        %p426 = scmp.lt.s32.totalorder %s28, 1
        %s427 = scalar_select %p426, %s28, 1
        %p428 = scmp.lt.s32.totalorder %s425, 0
        %s429 = scalar_select %p428, %s425, 0
        %s430 = sadd.s32 %s429, %s427
        %s431 = scalar_lea.vmem %s5, %s430
        %s432 = sld [smem:[#allocation7 + %s29]]
        %s433 = sld [smem:[#allocation6 + %s29]]
        %p434 = scmp.lt.s32.totalorder %s28, 1
        %s435 = scalar_select %p434, %s28, 1
        %p436 = scmp.lt.s32.totalorder %s433, 0
        %s437 = scalar_select %p436, %s433, 0
        %s438 = sadd.s32 %s437, %s435
        %s439 = smul.addr %s438, 8
        %s440 = scalar_lea.vmem %s6, %s439
        %s441 = sld [smem:[#allocation6 + %s29]]
        %s442 = sld [smem:[#allocation7 + %s29]]
        %p443 = scmp.lt.s32.totalorder %s28, 1
        %s444 = scalar_select %p443, %s28, 1
        %p445 = scmp.lt.s32.totalorder %s442, 0
        %s446 = scalar_select %p445, %s442, 0
        %s447 = sadd.s32 %s446, %s444
        %s448 = scalar_lea.vmem %s7, %s447
        %s449 = sld [smem:[#allocation7 + %s29]]
        %s450 = sld [smem:[#allocation6 + %s29]]
        %s451 = sld [smem:[#allocation7 + %s29]]
        %p452 = scmp.eq.s32.totalorder %s450, %s451
        %p453 = scmp.eq.s32.totalorder %s29, 0
        // Predicated region
        $region45: #{tpu_custom_call.1} parent=43 // pred_check
          %p454 = pneg %p453
        $region46: #{tpu_custom_call.1} parent=43 // pred_check_branch
          %456 = sbr.rel (%p454) target = $region48
        $region47: #{tpu_custom_call.1} parent=43 // pred_region
          %vm457 = vcmask 64512
          %458 = vst.msk [vmem:[#allocation3] sm:$0xff] %vm457, 0.0
          %459 = vst.msk [vmem:[#allocation4] sm:$0xff] %vm457, 0.0
        $region48: #{tpu_custom_call.1} parent=43 // pred_fallthru
          _
        // Predicated region
        $region49: #{tpu_custom_call.1} parent=43 // pred_check
          %p460 = pneg %p452
        $region50: #{tpu_custom_call.1} parent=43 // pred_check_branch
          %462 = sbr.rel (%p460) target = $region52
        $region51: #{tpu_custom_call.1} parent=43 // pred_region
          %v463 = vld [vmem:[%s405] sm:$0xff]
          %v464 = vld [vmem:[%s423] sm:$0xff]
          %466 = vset.pattern.permute.xlu0 0
          %467 = vperm.xlu0 %466, %v464
          %v468 = vpop.permute.xlu0 %467
          %v470 = vmul.f32 %v463, %v468
          %471 = vst [vmem:[#allocation2] sm:$0xff] %v470
        $region52: #{tpu_custom_call.1} parent=43 // pred_fallthru
          _
        %v472 = vld [vmem:[#allocation2] sm:$0xff]
        %v473 = vld [vmem:[%s414] sm:$0xff]
        %474 = vmatprep.subr.mxu0 0.0
        %475 = vmatpush1.xpose.msra.mxu0 %v473
        %476 = vmatprep.subr.mxu0 0.0
        %477 = vmatpush1.xpose.msra.mxu0 0.0
        %478 = vmatprep.subr.mxu0 0.0
        %479 = vmatpush1.xpose.msra.mxu0 0.0
        %480 = vmatprep.subr.mxu0 0.0
        %481 = vmatpush1.xpose.msra.mxu0 0.0
        %482 = vmatprep.subr.mxu0 0.0
        %483 = vmatpush1.xpose.msra.mxu0 0.0
        %484 = vmatprep.subr.mxu0 0.0
        %485 = vmatpush1.xpose.msra.mxu0 0.0
        %486 = vmatprep.subr.mxu0 0.0
        %487 = vmatpush1.xpose.msra.mxu0 0.0
        %488 = vmatprep.subr.mxu0 0.0
        %489 = vmatpush1.xpose.msra.mxu0 0.0
        %490 = vmatprep.subr.mxu0 0.0
        %491 = vmatpush1.xpose.msra.mxu0 0.0
        %492 = vmatprep.subr.mxu0 0.0
        %493 = vmatpush1.xpose.msra.mxu0 0.0
        %494 = vmatprep.subr.mxu0 0.0
        %495 = vmatpush1.xpose.msra.mxu0 0.0
        %496 = vmatprep.subr.mxu0 0.0
        %497 = vmatpush1.xpose.msra.mxu0 0.0
        %498 = vmatprep.subr.mxu0 0.0
        %499 = vmatpush1.xpose.msra.mxu0 0.0
        %500 = vmatprep.subr.mxu0 0.0
        %501 = vmatpush1.xpose.msra.mxu0 0.0
        %502 = vmatprep.subr.mxu0 0.0
        %503 = vmatpush1.xpose.msra.mxu0 0.0
        %504 = vmatprep.subr.mxu0 0.0
        %505 = vmatpush1.xpose.msra.mxu0 0.0
        %506 = vmatprep.subr.mxu0 0.0
        %507 = vmatpush1.xpose.msra.mxu0 0.0
        %508 = vmatprep.subr.mxu0 0.0
        %509 = vmatpush1.xpose.msra.mxu0 0.0
        %510 = vmatprep.subr.mxu0 0.0
        %511 = vmatpush1.xpose.msra.mxu0 0.0
        %512 = vmatprep.subr.mxu0 0.0
        %513 = vmatpush1.xpose.msra.mxu0 0.0
        %514 = vmatprep.subr.mxu0 0.0
        %515 = vmatpush1.xpose.msra.mxu0 0.0
        %516 = vmatprep.subr.mxu0 0.0
        %517 = vmatpush1.xpose.msra.mxu0 0.0
        %518 = vmatprep.subr.mxu0 0.0
        %519 = vmatpush1.xpose.msra.mxu0 0.0
        %520 = vmatprep.subr.mxu0 0.0
        %521 = vmatpush1.xpose.msra.mxu0 0.0
        %522 = vmatprep.subr.mxu0 0.0
        %523 = vmatpush1.xpose.msra.mxu0 0.0
        %524 = vmatprep.subr.mxu0 0.0
        %525 = vmatpush1.xpose.msra.mxu0 0.0
        %526 = vmatprep.subr.mxu0 0.0
        %527 = vmatpush1.xpose.msra.mxu0 0.0
        %528 = vmatprep.subr.mxu0 0.0
        %529 = vmatpush1.xpose.msra.mxu0 0.0
        %530 = vmatprep.subr.mxu0 0.0
        %531 = vmatpush1.xpose.msra.mxu0 0.0
        %532 = vmatprep.subr.mxu0 0.0
        %533 = vmatpush1.xpose.msra.mxu0 0.0
        %534 = vmatprep.subr.mxu0 0.0
        %535 = vmatpush1.xpose.msra.mxu0 0.0
        %536 = vmatprep.subr.mxu0 0.0
        %537 = vmatpush1.xpose.msra.mxu0 0.0
        %538 = vmatprep.mubr.f32.mxu0 0.0
        %539 = vmatmul.mubr.f32.gmra.mrb[0].mxu0 %v472
        %v540 = vpop.f32.mrb[0].mxu0
        %v541 = vadd.f32 0.0, %v540
        %v542 = vpop.f32.mrb[0].mxu0
        %543 = vdwg.mxu0
        %v544 = vld [vmem:[%s431] sm:$0x1]
        %v546 = vlaneseq
        %v547 = vshrl.u32 %v546, 7
        %v548 = vsub.s32 0, %v547
        %v549 = vrot.slane %v544, %v548
        %v551 = vmul.f32 %v541, %v549
        %v552 = vld [vmem:[%s440] sm:$0xff]
        %v553 = vld [vmem:[%s448] sm:$0x1]
        %554 = vset.pattern.permute.xlu0 0
        %555 = vperm.xlu0 %554, %v552
        %v556 = vpop.permute.xlu0 %555
        %v557 = vlaneseq
        %v558 = vshrl.u32 %v557, 7
        %v559 = vsub.s32 0, %v558
        %v560 = vrot.slane %v553, %v559
        %vm561 = vcmp.eq.s32.totalorder %v556, %v560
        %v562 = vsub.f32 0.0, %v551
        %v563 = vsel %vm561, %v562, %v551
        %v564 = vmax.f32 %v563, 0.0
        %v565 = vand.u32 2147483647, %v551
        %v566 = vsub.f32 0.0, %v565
        %v567 = vmul.f32 %v566, 1.442695
        %v568 = vpow.pop %v567
        %v569 = vadd.f32 %v568, 1.0
        %v570 = vlog2.pop %v569
        %v571 = vmul.f32 %v570, 0.6931472
        %v572 = vadd.f32 %v564, %v571
        %v573 = vld [vmem:[#allocation3] sm:$0xff]
        %v574 = vadd.f32 %v573, %v572
        %vm575 = vcmask 64512
        %576 = vst.msk [vmem:[#allocation3] sm:$0xff] %vm575, %v574
        // Predicated region
        $region53: #{tpu_custom_call.1} parent=43 // pred_check
          %p577 = pneg %p452
        $region54: #{tpu_custom_call.1} parent=43 // pred_check_branch
          %579 = sbr.rel (%p577) target = $region56
        $region55: #{tpu_custom_call.1} parent=43 // pred_region
          %v580 = vld [vmem:[#allocation4] sm:$0xff]
          %v581 = vadd.f32 %v580, %v572
          %582 = vst.msk [vmem:[#allocation4] sm:$0xff] %vm575, %v581
        $region56: #{tpu_custom_call.1} parent=43 // pred_fallthru
          _
        // Predicated region
        $region57: #{tpu_custom_call.1} parent=43 // pred_check
          %p583 = pneg %p453
        $region58: #{tpu_custom_call.1} parent=43 // pred_check_branch
          %585 = sbr.rel (%p583) target = $region60
        $region59: #{tpu_custom_call.1} parent=43 // pred_region
          %v586 = vld [vmem:[#allocation3] sm:$0xff]
          %v587 = vsel %vm575, %v586, 0.0
          %588 = vadd.xlane.f32.xlu0 %v587
          %v589 = vpop.xlane.xlu0 %588
          %v590 = vrot.slane %v589, 4
          %v591 = vadd.f32 %v589, %v590
          %v592 = vrot.slane %v591, 2
          %v593 = vadd.f32 %v591, %v592
          %v594 = vrot.slane %v593, 1
          %v595 = vadd.f32 %v593, %v594
          %s596 = vtos %v595
          %s597 = smul.f32 %s596, 2.0
          %v598 = vld [vmem:[#allocation4] sm:$0xff]
          %v599 = vsel %vm575, %v598, 0.0
          %600 = vadd.xlane.f32.xlu0 %v599
          %v601 = vpop.xlane.xlu0 %600
          %v602 = vrot.slane %v601, 4
          %v603 = vadd.f32 %v601, %v602
          %v604 = vrot.slane %v603, 2
          %v605 = vadd.f32 %v603, %v604
          %v606 = vrot.slane %v605, 1
          %v607 = vadd.f32 %v605, %v606
          %s608 = vtos %v607
          %s609 = ssub.f32 %s597, %s608
          %v610 = vstv %s609
          %611 = vst [vmem:[%s397] sm:$0xff] %v610
        $region60: #{tpu_custom_call.1} parent=43 // pred_fallthru
          _
        %s612 = sand.u32 %s224, 1
        %s613 = scalar_lea.sflag [#allocation9], %s612
        %s614 = sand.u32 %s224, 1
        %s615 = smul.addr %s614, 8
        %s616 = scalar_lea.vmem [#allocation8], %s615
        // Predicated region
        $region61: #{tpu_custom_call.1} parent=43 // pred_check
          %p617 = pneg %p234
        $region62: #{tpu_custom_call.1} parent=43 // pred_check_branch
          %619 = sbr.rel (%p617) target = $region64
        $region63: #{tpu_custom_call.1} parent=43 // pred_region
          %s621 = ssub.s32 128, 128
          %622 = vsyncadd %s613, %s621
          %s623 = smul.addr %s28, 128
          %s624 = scalar_lea.hbm %s8, %s623
          %s626 = sshll.u32 %s616, 4
          %s627 = int_to_ptr.vmem [resolvable:$true] %s626
          %629 = dma.vmem_to_hbm [thread:$0]  %s627, 128, %s624, %s613
        $region64: #{tpu_custom_call.1} parent=43 // pred_fallthru
          _
      $region44: #{tpu_custom_call.1} parent=5 // pred_fallthru
        _
      %p630 = scmp.le.s32.totalorder 2, %s19
      // Predicated region
      $region65: #{tpu_custom_call.1} parent=5 // pred_check
        %p631 = pneg %p630
      $region66: #{tpu_custom_call.1} parent=5 // pred_check_branch
        %633 = sbr.rel (%p631) target = $region68
      $region67: #{tpu_custom_call.1} parent=5 // pred_region
        %s634 = ssub.s32 %s19, 2
        // Predicated region
        $region69: #{tpu_custom_call.1} parent=67 // pred_check
          %p635 = pneg %p240
        $region70: #{tpu_custom_call.1} parent=67 // pred_check_branch
          %637 = sbr.rel (%p635) target = $region72
        $region71: #{tpu_custom_call.1} parent=67 // pred_region
          %s638 = sand.u32 %s225, 1
          %s639 = scalar_lea.sflag [#allocation9], %s638
          %s640 = sand.u32 %s225, 1
          %s641 = smul.addr %s640, 8
          %s642 = scalar_lea.vmem [#allocation8], %s641
          %643 = dma.done %s639, 128
        $region72: #{tpu_custom_call.1} parent=67 // pred_fallthru
          _
      $region68: #{tpu_custom_call.1} parent=5 // pred_fallthru
        _
    $region6: #{tpu_custom_call.1} parent=1 // loop_footer
      %s23 = sadd.s32 1, %s19
    $region7: #{tpu_custom_call.1} parent=1 // loop_footer_branch
      %18 = sbr.rel target = $region3
    $region8: #{tpu_custom_call.1} parent=1 // loop_exit
      _
    %644 = vsyncpa [#allocation9], 1
    %s645 = scalar_lea.sflag [#allocation9], 1
    %646 = vsyncpa %s645, 1

</llo_original>
